<compile_context>
chip_gen: v7x
topology: tpu7x:2x2x1
jax: 0.10.0
libtpu: 0.0.40
codegen_flags: <defaults>
</compile_context>

<pallas_src>
import jax
import jax.numpy as jnp
from jax.experimental import pallas as pl
from jax.experimental.pallas import tpu as pltpu


# Packed parameter layout, one (64, 128) f32 array (lanes = columns):
#   cols  0:64   W2^T                      (64, 64)
#   cols 64:72   W1^T zero-padded 4 -> 8   (64, 8)   (pad cols multiply the
#                                                     zero pad rows of x^T)
#   col  72      b1                        (64,)
#   col  73      b2                        (64,)
#   col  74      w3 = W3[:, 0]             (64,)
#   col  75      b3 (at row 0)
#   cols 76:128  zero padding
_P_ROWS, _P_COLS = 64, 128


def dqn_kernel(xt_ref, p_ref, o_ref):
    # x^T tile: (8, TM) f32 (rows 4:8 are zero padding); cast to bf16 for MXU.
    x = xt_ref[...].astype(jnp.bfloat16)

    w2t = p_ref[:, 0:64].astype(jnp.bfloat16)     # (64, 64)
    w1t = p_ref[:, 64:72].astype(jnp.bfloat16)    # (64, 8)
    b1 = p_ref[:, 72:73]                          # (64, 1) f32
    b2 = p_ref[:, 73:74]                          # (64, 1) f32
    w3 = p_ref[:, 74:75]                          # (64, 1) f32
    b3 = p_ref[0:1, 75:76]                        # (1, 1)  f32

    # Layer 1: Linear(4->64) + ReLU  (K padded to 8, bf16 x bf16 -> f32 acc)
    h1 = jnp.dot(w1t, x, preferred_element_type=jnp.float32)       # (64, TM)
    h1 = jnp.maximum(h1 + b1, 0.0)
    # Layer 2: Linear(64->64) + ReLU
    h2 = jnp.dot(w2t, h1.astype(jnp.bfloat16),
                 preferred_element_type=jnp.float32)                # (64, TM)
    h2 = jnp.maximum(h2 + b2, 0.0)
    # Layer 3: Linear(64->1): VPU multiply + sublane reduce (MXU would use a
    # single output column); bias added in f32.
    q = jnp.sum(h2 * w3, axis=0, keepdims=True) + b3                # (1, TM)
    o_ref[...] = q.astype(o_ref.dtype)


def _round_up(n, m):
    return ((n + m - 1) // m) * m


def pack_params(w1, b1, w2, b2, w3, b3):
    """Pack all parameters into one resident (64, 128) f32 array."""
    p = jnp.zeros((_P_ROWS, _P_COLS), jnp.float32)
    p = p.at[:, 0:64].set(w2.astype(jnp.float32).T)      # W2^T
    p = p.at[:, 64:68].set(w1.astype(jnp.float32).T)     # W1^T (cols 68:72 = 0)
    p = p.at[:, 72].set(b1.astype(jnp.float32))
    p = p.at[:, 73].set(b2.astype(jnp.float32))
    p = p.at[:, 74].set(w3[:, 0].astype(jnp.float32))
    p = p.at[0, 75].set(b3[0].astype(jnp.float32))
    return p


def dqn_forward(x, packed_params, *, block_cols=4096):
    """Q(x) for x of shape (B, 4); returns (B, 1) f32."""
    B, feat = x.shape
    assert feat == 4, "DeepQNetwork expects 4 input features"

    # Pad the batch only to a multiple of 256 lanes (not of the tile), fused
    # into the transpose that builds the lane-dense x^T input.
    b_pad = _round_up(max(B, 1), 256)
    # TM: multiple of 128, capped at block_cols, and <= b_pad/2 so the
    # "parallel" batch grid always has >=2 steps (dual-TC on v7x).
    tm = max(128, min(block_cols, b_pad // 2))
    grid = pl.cdiv(b_pad, tm)

    # x^T, zero-padded: features 4 -> 8 (clean K for the first matmul) and
    # batch -> b_pad lanes.  One small wrapper pass (layout plumbing).
    xt = jnp.zeros((8, b_pad), jnp.float32).at[:feat, :B].set(
        x.astype(jnp.float32).T)

    out = pl.pallas_call(
        dqn_kernel,
        out_shape=jax.ShapeDtypeStruct((1, b_pad), jnp.float32),
        grid_spec=pltpu.PrefetchScalarGridSpec(
            num_scalar_prefetch=0,
            grid=(grid,),
            in_specs=[
                # x^T: pipelined, lane-dense batch tiles.
                pl.BlockSpec((8, tm), lambda i: (0, i)),
                # params: constant index_map -> fetched once, VMEM-resident.
                pl.BlockSpec((_P_ROWS, _P_COLS), lambda i: (0, 0)),
            ],
            out_specs=pl.BlockSpec((1, tm), lambda i: (0, i)),
        ),
        compiler_params=pltpu.CompilerParams(
            dimension_semantics=("parallel",),   # dual-TC sharding on v7x
        ),
    )(xt, packed_params)

    # (1, b_pad) row-major -> (B, 1); padding lanes discarded.
    return jnp.reshape(out[:, :B], (B, 1))


def xavier_uniform(key, fan_in, fan_out, dtype=jnp.float32):
    # matches torch.nn.init.xavier_uniform_ (gain=1); stored (in, out)
    limit = (6.0 / (fan_in + fan_out)) ** 0.5
    return jax.random.uniform(key, (fan_in, fan_out), dtype, -limit, limit)


def reference_forward(x, w1, b1, w2, b2, w3, b3):
    # Mirrors the kernel's numerics: bf16 matmul operands, f32 accumulation,
    # f32 biases and final layer.
    h1 = jnp.dot(x.astype(jnp.bfloat16), w1.astype(jnp.bfloat16),
                 preferred_element_type=jnp.float32) + b1
    h1 = jax.nn.relu(h1)
    h2 = jnp.dot(h1.astype(jnp.bfloat16), w2.astype(jnp.bfloat16),
                 preferred_element_type=jnp.float32) + b2
    h2 = jax.nn.relu(h2)
    return h2 @ w3 + b3


if __name__ == "__main__":
    key = jax.random.PRNGKey(0)
    k_x, k_w1, k_w2, k_w3, k_b1, k_b2, k_b3, _ = jax.random.split(key, 8)

    # TODO(synk): torch.load('tetris') checkpoint is replaced by deterministic
    # in-script init (xavier_uniform weights, small random biases).
    w1 = xavier_uniform(k_w1, 4, 64)          # (in, out): forward is x @ W + b
    b1 = 0.1 * jax.random.normal(k_b1, (64,), jnp.float32)
    w2 = xavier_uniform(k_w2, 64, 64)
    b2 = 0.1 * jax.random.normal(k_b2, (64,), jnp.float32)
    w3 = xavier_uniform(k_w3, 64, 1)
    b3 = 0.1 * jax.random.normal(k_b3, (1,), jnp.float32)

    params = pack_params(w1, b1, w2, b2, w3, b3)

    # Case 1: small batch -> b_pad=256, tm=128, grid=2.
    # Case 2: batch not a multiple of 128 -> exercises lane padding, grid=2.
    for case, B in enumerate((64, 300), start=1):
        kx = jax.random.fold_in(k_x, B)
        x = jax.random.normal(kx, (B, 4), dtype=jnp.float32)
        out = jax.block_until_ready(dqn_forward(x, params))
        ref = reference_forward(x, w1, b1, w2, b2, w3, b3)
        assert out.shape == (B, 1), (case, out.shape)
        assert jnp.allclose(out, ref, atol=5e-3, rtol=5e-3), f"mismatch (case {case})"

    print("KERNEL_OK")
</pallas_src>

<mosaic_0001>
module attributes {stable_mosaic.version = 11 : i64} {
  func.func @dqn_kernel(%arg0: i32, %arg1: memref<8x128xf32, #tpu.memory_space<vmem>>, %arg2: memref<64x128xf32, #tpu.memory_space<vmem>>, %arg3: memref<1x128xf32, #tpu.memory_space<vmem>>) attributes {dimension_semantics = [#tpu.dimension_semantics<parallel>], iteration_bounds = array<i64: 2>, scalar_prefetch = 0 : i64, scratch_operands = 0 : i64, tpu.core_type = #tpu.core_type<tc>, window_params = [{transform_indices = @transform_0, window_bounds = array<i64: 8, 128>}, {pipeline_mode = #tpu.pipeline_mode<synchronous>, transform_indices = @transform_1, window_bounds = array<i64: 64, 128>}, {transform_indices = @transform_2, window_bounds = array<i64: 1, 128>}]} {
    %c0 = arith.constant 0 : index
    %c0_0 = arith.constant 0 : index
    %0 = vector.load %arg1[%c0, %c0_0] : memref<8x128xf32, #tpu.memory_space<vmem>>, vector<8x128xf32>
    %1 = arith.truncf %0 : vector<8x128xf32> to vector<8x128xbf16>
    %c0_1 = arith.constant 0 : index
    %c0_2 = arith.constant 0 : index
    %2 = vector.load %arg2[%c0_1, %c0_2] : memref<64x128xf32, #tpu.memory_space<vmem>>, vector<64x64xf32>
    %3 = arith.truncf %2 : vector<64x64xf32> to vector<64x64xbf16>
    %c0_3 = arith.constant 0 : index
    %c64 = arith.constant 64 : index
    %4 = vector.load %arg2[%c0_3, %c64] : memref<64x128xf32, #tpu.memory_space<vmem>>, vector<64x8xf32>
    %5 = arith.truncf %4 : vector<64x8xf32> to vector<64x8xbf16>
    %c0_4 = arith.constant 0 : index
    %c72 = arith.constant 72 : index
    %6 = vector.load %arg2[%c0_4, %c72] : memref<64x128xf32, #tpu.memory_space<vmem>>, vector<64x1xf32>
    %c0_5 = arith.constant 0 : index
    %c73 = arith.constant 73 : index
    %7 = vector.load %arg2[%c0_5, %c73] : memref<64x128xf32, #tpu.memory_space<vmem>>, vector<64x1xf32>
    %c0_6 = arith.constant 0 : index
    %c74 = arith.constant 74 : index
    %8 = vector.load %arg2[%c0_6, %c74] : memref<64x128xf32, #tpu.memory_space<vmem>>, vector<64x1xf32>
    %c0_7 = arith.constant 0 : index
    %c75 = arith.constant 75 : index
    %9 = vector.load %arg2[%c0_7, %c75] : memref<64x128xf32, #tpu.memory_space<vmem>>, vector<1x1xf32>
    %cst = arith.constant dense<0.000000e+00> : vector<64x128xf32>
    %10 = tpu.matmul %5, %1, %cst {dimension_numbers = #tpu.dot_dimension_numbers<[1], [0], [0], [1], [0, 0, 1, 1], [], []>} : vector<64x8xbf16>, vector<8x128xbf16>, vector<64x128xf32> -> vector<64x128xf32>
    %11 = vector.broadcast %6 : vector<64x1xf32> to vector<64x128xf32>
    %12 = arith.addf %10, %11 : vector<64x128xf32>
    %cst_8 = arith.constant 0.000000e+00 : f32
    %13 = vector.broadcast %cst_8 : f32 to vector<64x128xf32>
    %14 = arith.maximumf %12, %13 : vector<64x128xf32>
    %15 = arith.truncf %14 : vector<64x128xf32> to vector<64x128xbf16>
    %cst_9 = arith.constant dense<0.000000e+00> : vector<64x128xf32>
    %16 = tpu.matmul %3, %15, %cst_9 {dimension_numbers = #tpu.dot_dimension_numbers<[1], [0], [0], [1], [0, 0, 1, 1], [], []>} : vector<64x64xbf16>, vector<64x128xbf16>, vector<64x128xf32> -> vector<64x128xf32>
    %17 = vector.broadcast %7 : vector<64x1xf32> to vector<64x128xf32>
    %18 = arith.addf %16, %17 : vector<64x128xf32>
    %cst_10 = arith.constant 0.000000e+00 : f32
    %19 = vector.broadcast %cst_10 : f32 to vector<64x128xf32>
    %20 = arith.maximumf %18, %19 : vector<64x128xf32>
    %21 = vector.broadcast %8 : vector<64x1xf32> to vector<64x128xf32>
    %22 = arith.mulf %20, %21 : vector<64x128xf32>
    %cst_11 = arith.constant dense<0.000000e+00> : vector<128xf32>
    %23 = vector.multi_reduction <add>, %22, %cst_11 [0] : vector<64x128xf32> to vector<128xf32>
    %24 = vector.shape_cast %23 : vector<128xf32> to vector<1x128xf32>
    %25 = vector.broadcast %9 : vector<1x1xf32> to vector<1x128xf32>
    %26 = arith.addf %24, %25 : vector<1x128xf32>
    %c0_12 = arith.constant 0 : index
    %c0_13 = arith.constant 0 : index
    %27 = vector.load %arg3[%c0_12, %c0_13] : memref<1x128xf32, #tpu.memory_space<vmem>>, vector<1x128xf32>
    tpu.vector_store %arg3[%c0_12, %c0_13], %26 {strides = array<i32>} : memref<1x128xf32, #tpu.memory_space<vmem>>, vector<1x128xf32>,
    return
  }
  func.func @transform_0(%arg0: i32) -> (i32, i32) {
    %c0_i32 = arith.constant 0 : i32
    %c0_i32_0 = arith.constant 0 : i32
    return %c0_i32, %arg0 : i32, i32
  }
  func.func @transform_1(%arg0: i32) -> (i32, i32) {
    %c0_i32 = arith.constant 0 : i32
    %c0_i32_0 = arith.constant 0 : i32
    %c0_i32_1 = arith.constant 0 : i32
    return %c0_i32, %c0_i32_0 : i32, i32
  }
  func.func @transform_2(%arg0: i32) -> (i32, i32) {
    %c0_i32 = arith.constant 0 : i32
    %c0_i32_0 = arith.constant 0 : i32
    return %c0_i32, %arg0 : i32, i32
  }
}

</mosaic_0001>

<llo_original>
// kernel: tpu_custom_call.1
$region0: #{tpu_custom_call.1}
  #allocation0 [shape = 'u32[]', space=smem, size = 0x4, offset = 0x4, fixed_abs, tag = 'smem constant byte address 0x4 - core index']
  #allocation1 [shape = 'u32[144,128]{1,0:T(1,128)}', space=vmem, size = 0x12000, scoped, tag = 'internal scratch']
  %s0 = inlined_call_operand.hbm [shape: f32[8,256], index: 0, kind: input, shape index: {}]
  %s1 = inlined_call_operand.hbm [shape: f32[64,128], index: 1, kind: input, shape index: {}]
  %s2 = inlined_call_operand.hbm [shape: f32[1,256], index: 2, kind: output, shape index: {}]
  %s3 = sld [smem:[#allocation0]]
  $region49: #{tpu_custom_call.1} parent=0
    _
  %s5 = ssub.s32 1, %s3
  %s6 = scalar_select 0, %s5, %s3
  $region1: #{tpu_custom_call.1} parent=0
    #allocation2 [shape = 'u8[8192]{0}', space=vmem, size = 0x2000, scoped, tag = 'input window, operand 0']
    #allocation3 [shape = 's32[2]{0}', space=sflag, size = 0x8, scoped, tag = 'scoped memory for tpu_custom_call.1']
    #allocation4 [shape = 's32[2]{0}', space=sflag, size = 0x8, scoped, tag = 'scoped memory for tpu_custom_call.1']
    #allocation5 [shape = 'u8[32768]{0}', space=vmem, size = 0x8000, scoped, tag = 'input window, operand 1, single buffered']
    #allocation6 [shape = 's32[1]{0}', space=sflag, size = 0x4, scoped, tag = 'scoped memory for tpu_custom_call.1']
    #allocation7 [shape = 'u8[1024]{0}', space=vmem, size = 0x400, scoped, tag = 'output window, operand 0']
    %7 = vsyncpa [#allocation3], 0
    %s8 = scalar_lea.sflag [#allocation3], 1
    %9 = vsyncpa %s8, 0
    %10 = vsyncpa [#allocation6], 0
    %11 = vsyncpa [#allocation4], 0
    %s12 = scalar_lea.sflag [#allocation4], 1
    %13 = vsyncpa %s12, 0
    loop: start=0, step=1, limit=4
    $region2: #{tpu_custom_call.1} parent=1 // loop_pre_header
      _
    $region3: #{tpu_custom_call.1} parent=1 // loop_header
      %s15 = sphi 0, %s19
      %p16 = scmp.ge.s32.totalorder %s15, 4
      %s25 = sphi 0, %s27
      %s28 = sphi 0, %s25
      %s29 = sphi 0, %s28
      %s45 = sphi 0, %s29
      %s49 = sphi 0, %s49
      %s51 = sphi 0, %s49
      %s52 = sphi 0, %s51
      %s66 = sphi 0, %s52
      %s72 = sphi 0, %s74
      %s75 = sphi 0, %s72
      %s76 = sphi 0, %s75
      %s92 = sphi 0, %s76
    $region4: #{tpu_custom_call.1} parent=1 // loop_header_branch
      %18 = sbr.rel (%p16) target = $region8
    $region5: #{tpu_custom_call.1} parent=1 // loop_body
      %s20 = ssub.s32 %s15, 1
      %s21 = ssub.s32 %s15, 2
      %s22 = sadd.s32 %s15, 1
      %s23 = ssub.s32 %s15, %s22
      %p24 = scmp.eq.s32.totalorder %s23, 0
      %s26 = sadd.s32 %s25, 1
      %s27 = scalar_select %p24, %s25, %s26
      %p30 = pneg %p24
      %p31 = scmp.eq.s32.totalorder %s15, 1
      %p32 = por %p30, %p31
      %p33 = scmp.ne.s32.totalorder %s25, %s28
      %p34 = scmp.eq.s32.totalorder %s15, 0
      %p35 = por %p33, %p34
      %p36 = scmp.ne.s32.totalorder %s25, %s28
      %p37 = scmp.eq.s32.totalorder %s20, 1
      %p38 = por %p36, %p37
      %p39 = scmp.ne.s32.totalorder %s28, %s29
      %p40 = scmp.eq.s32.totalorder %s20, 0
      %p41 = por %p39, %p40
      %p42 = scmp.ne.s32.totalorder %s28, %s29
      %p43 = scmp.eq.s32.totalorder %s21, 1
      %p44 = por %p42, %p43
      %p46 = scmp.ne.s32.totalorder %s29, %s45
      %p47 = scmp.eq.s32.totalorder %s21, 0
      %p48 = por %p46, %p47
      %s50 = sadd.s32 %s49, 1
      %p53 = scmp.eq.s32.totalorder %s15, 1
      %p54 = scmp.ne.s32.totalorder %s49, %s51
      %p55 = scmp.eq.s32.totalorder %s15, 0
      %p56 = por %p54, %p55
      %p57 = scmp.ne.s32.totalorder %s49, %s51
      %p58 = scmp.eq.s32.totalorder %s20, 1
      %p59 = por %p57, %p58
      %p60 = scmp.ne.s32.totalorder %s51, %s52
      %p61 = scmp.eq.s32.totalorder %s20, 0
      %p62 = por %p60, %p61
      %p63 = scmp.ne.s32.totalorder %s51, %s52
      %p64 = scmp.eq.s32.totalorder %s21, 1
      %p65 = por %p63, %p64
      %p67 = scmp.ne.s32.totalorder %s52, %s66
      %p68 = scmp.eq.s32.totalorder %s21, 0
      %p69 = por %p67, %p68
      %s70 = ssub.s32 %s15, %s22
      %p71 = scmp.eq.s32.totalorder %s70, 0
      %s73 = sadd.s32 %s72, 1
      %s74 = scalar_select %p71, %s72, %s73
      %p77 = pneg %p71
      %p78 = scmp.eq.s32.totalorder %s15, 1
      %p79 = por %p77, %p78
      %p80 = scmp.ne.s32.totalorder %s72, %s75
      %p81 = scmp.eq.s32.totalorder %s15, 0
      %p82 = por %p80, %p81
      %p83 = scmp.ne.s32.totalorder %s72, %s75
      %p84 = scmp.eq.s32.totalorder %s20, 1
      %p85 = por %p83, %p84
      %p86 = scmp.ne.s32.totalorder %s75, %s76
      %p87 = scmp.eq.s32.totalorder %s20, 0
      %p88 = por %p86, %p87
      %p89 = scmp.ne.s32.totalorder %s75, %s76
      %p90 = scmp.eq.s32.totalorder %s21, 1
      %p91 = por %p89, %p90
      %p93 = scmp.ne.s32.totalorder %s76, %s92
      %p94 = scmp.eq.s32.totalorder %s21, 0
      %p95 = por %p93, %p94
      %p96 = scmp.le.s32.totalorder 1, %s15
      %p97 = scmp.lt.s32.totalorder %s15, 3
      %p98 = pnand %p96, %p97
      %p99 = pneg %p98
      // Predicated region
      $region9: #{tpu_custom_call.1} parent=5 // pred_check
        _
      $region10: #{tpu_custom_call.1} parent=5 // pred_check_branch
        %101 = sbr.rel (%p98) target = $region12
      $region11: #{tpu_custom_call.1} parent=5 // pred_region
        %s102 = ssub.s32 %s15, 1
        // Predicated region
        $region13: #{tpu_custom_call.1} parent=11 // pred_check
          %p103 = pneg %p62
        $region14: #{tpu_custom_call.1} parent=11 // pred_check_branch
          %105 = sbr.rel (%p103) target = $region16
        $region15: #{tpu_custom_call.1} parent=11 // pred_region
          %s107 = ssub.s32 1024, 1024
          %108 = vsyncadd [#allocation6], %s107
          %s109 = sshll.u32 [#allocation5], 4
          %s110 = int_to_ptr.vmem [resolvable:$true] %s109
          %115 = dma.hbm_to_vmem [thread:$0]  %s1, 1024, %s110, [#allocation6], 128, 128, 8
        $region16: #{tpu_custom_call.1} parent=11 // pred_fallthru
          _
      $region12: #{tpu_custom_call.1} parent=5 // pred_fallthru
        _
      %p116 = scmp.lt.s32.totalorder %s15, 2
      // Predicated region
      $region17: #{tpu_custom_call.1} parent=5 // pred_check
        %p117 = pneg %p116
      $region18: #{tpu_custom_call.1} parent=5 // pred_check_branch
        %119 = sbr.rel (%p117) target = $region20
      $region19: #{tpu_custom_call.1} parent=5 // pred_region
        // Predicated region
        $region21: #{tpu_custom_call.1} parent=19 // pred_check
          %p120 = pneg %p35
        $region22: #{tpu_custom_call.1} parent=19 // pred_check_branch
          %122 = sbr.rel (%p120) target = $region24
        $region23: #{tpu_custom_call.1} parent=19 // pred_region
          %s123 = sand.u32 %s25, 1
          %s124 = scalar_lea.sflag [#allocation3], %s123
          %s125 = sand.u32 %s25, 1
          %s126 = smul.addr %s125, 8
          %s127 = scalar_lea.vmem [#allocation2], %s126
          %s129 = ssub.s32 128, 128
          %130 = vsyncadd %s124, %s129
          %s131 = smul.addr %s15, 128
          %s132 = scalar_lea.hbm %s0, %s131
          %s134 = sshll.u32 %s127, 4
          %s135 = int_to_ptr.vmem [resolvable:$true] %s134
          %137 = dma.hbm_to_vmem [thread:$0]  %s132, 128, %s135, %s124
        $region24: #{tpu_custom_call.1} parent=19 // pred_fallthru
          _
      $region20: #{tpu_custom_call.1} parent=5 // pred_fallthru
        _
      %p138 = scmp.le.s32.totalorder 1, %s15
      %p139 = scmp.lt.s32.totalorder %s15, 3
      %p140 = pnand %p138, %p139
      %p141 = pneg %p140
      // Predicated region
      $region25: #{tpu_custom_call.1} parent=5 // pred_check
        _
      $region26: #{tpu_custom_call.1} parent=5 // pred_check_branch
        %143 = sbr.rel (%p140) target = $region28
      $region27: #{tpu_custom_call.1} parent=5 // pred_region
        %s144 = ssub.s32 %s15, 1
        %s145 = sand.u32 %s28, 1
        %s146 = scalar_lea.sflag [#allocation3], %s145
        %s147 = sand.u32 %s28, 1
        %s148 = smul.addr %s147, 8
        %s149 = scalar_lea.vmem [#allocation2], %s148
        // Predicated region
        $region29: #{tpu_custom_call.1} parent=27 // pred_check
          %p150 = pneg %p41
        $region30: #{tpu_custom_call.1} parent=27 // pred_check_branch
          %152 = sbr.rel (%p150) target = $region32
        $region31: #{tpu_custom_call.1} parent=27 // pred_region
          %153 = dma.done %s146, 128
        $region32: #{tpu_custom_call.1} parent=27 // pred_fallthru
          _
        // Predicated region
        $region33: #{tpu_custom_call.1} parent=27 // pred_check
          %p154 = pneg %p62
        $region34: #{tpu_custom_call.1} parent=27 // pred_check_branch
          %156 = sbr.rel (%p154) target = $region36
        $region35: #{tpu_custom_call.1} parent=27 // pred_region
          %157 = dma.done [#allocation6], 1024
        $region36: #{tpu_custom_call.1} parent=27 // pred_fallthru
          _
        %s158 = sand.u32 %s28, 1
        %s159 = scalar_lea.sflag [#allocation3], %s158
        %s160 = sand.u32 %s28, 1
        %s161 = smul.addr %s160, 8
        %s162 = scalar_lea.vmem [#allocation2], %s161
        %p163 = pneg %p41
        %p164 = pneg %p38
        %p165 = pneg %p62
        %p166 = pneg %p59
        %p167 = pneg %p88
        %p168 = pneg %p85
        %s169 = sand.u32 %s75, 1
        %s170 = scalar_lea.sflag [#allocation4], %s169
        %s171 = sand.u32 %s75, 1
        %s172 = scalar_lea.vmem [#allocation7], %s171
        %v174 = vld [vmem:[%s149] sm:$0xff]
        %v175 = vpack.c.bf16 %v174, %v174
        %v176 = vld [vmem:[#allocation5] sm:$0xff]
        %v177 = vld [vmem:[#allocation5 + $0x8] sm:$0xff]
        %v178 = vld [vmem:[#allocation5 + $0x10] sm:$0xff]
        %v179 = vld [vmem:[#allocation5 + $0x18] sm:$0xff]
        %v180 = vld [vmem:[#allocation5 + $0x20] sm:$0xff]
        %v181 = vld [vmem:[#allocation5 + $0x28] sm:$0xff]
        %v182 = vld [vmem:[#allocation5 + $0x30] sm:$0xff]
        %v183 = vld [vmem:[#allocation5 + $0x38] sm:$0xff]
        %v184 = vpack.c.bf16 %v177, %v176
        %v185 = vpack.c.bf16 %v179, %v178
        %v186 = vpack.c.bf16 %v181, %v180
        %v187 = vpack.c.bf16 %v183, %v182
        %v188 = vld [vmem:[#allocation5] sm:$0x1]
        %190 = vset.pattern.permute.xlu0 72
        %191 = vperm.xlu0 %190, %v176
        %v192 = vpop.permute.xlu0 %191
        %195 = vset.pattern.permute.xlu0 72
        %196 = vperm.xlu0 %195, %v177
        %v197 = vpop.permute.xlu0 %196
        %200 = vset.pattern.permute.xlu0 72
        %201 = vperm.xlu0 %200, %v178
        %v202 = vpop.permute.xlu0 %201
        %205 = vset.pattern.permute.xlu0 72
        %206 = vperm.xlu0 %205, %v179
        %v207 = vpop.permute.xlu0 %206
        %210 = vset.pattern.permute.xlu0 72
        %211 = vperm.xlu0 %210, %v180
        %v212 = vpop.permute.xlu0 %211
        %215 = vset.pattern.permute.xlu0 72
        %216 = vperm.xlu0 %215, %v181
        %v217 = vpop.permute.xlu0 %216
        %220 = vset.pattern.permute.xlu0 72
        %221 = vperm.xlu0 %220, %v182
        %v222 = vpop.permute.xlu0 %221
        %225 = vset.pattern.permute.xlu0 72
        %226 = vperm.xlu0 %225, %v183
        %v227 = vpop.permute.xlu0 %226
        %233 = vrot.lane.b32.xlu0 %v184, 64
        %v234 = vpop.permute.xlu0 %233
        %235 = vrot.lane.b32.xlu0 %v185, 64
        %v236 = vpop.permute.xlu0 %235
        %237 = vrot.lane.b32.xlu0 %v186, 64
        %v238 = vpop.permute.xlu0 %237
        %239 = vrot.lane.b32.xlu0 %v187, 64
        %v240 = vpop.permute.xlu0 %239
        %vm241 = vcmask 64512
        %v243 = vsel %vm241, %v234, 0
        %v246 = vsel %vm241, %v236, 0
        %v249 = vsel %vm241, %v238, 0
        %v252 = vsel %vm241, %v240, 0
        %vm254 = vcmask 1043456
        %v256 = vsel %vm254, %v175, 0
        %258 = vmatprep.subr.bf16.mxu0 0
        %259 = vmatpush1.bf16.msra.mxu0 %v256
        %260 = vmatprep.subr.bf16.mxu0 0
        %261 = vmatpush1.bf16.msra.mxu0 0
        %262 = vmatprep.subr.bf16.mxu0 0
        %263 = vmatpush1.bf16.msra.mxu0 0
        %264 = vmatprep.subr.bf16.mxu0 0
        %265 = vmatpush1.bf16.msra.mxu0 0
        %266 = vmatprep.subr.bf16.mxu0 0
        %267 = vmatpush1.bf16.msra.mxu0 0
        %268 = vmatprep.subr.bf16.mxu0 0
        %269 = vmatpush1.bf16.msra.mxu0 0
        %270 = vmatprep.subr.bf16.mxu0 0
        %271 = vmatpush1.bf16.msra.mxu0 0
        %272 = vmatprep.subr.bf16.mxu0 0
        %273 = vmatpush1.bf16.msra.mxu0 0
        %274 = vmatprep.subr.bf16.mxu0 0
        %275 = vmatpush1.bf16.msra.mxu0 0
        %276 = vmatprep.subr.bf16.mxu0 0
        %277 = vmatpush1.bf16.msra.mxu0 0
        %278 = vmatprep.subr.bf16.mxu0 0
        %279 = vmatpush1.bf16.msra.mxu0 0
        %280 = vmatprep.subr.bf16.mxu0 0
        %281 = vmatpush1.bf16.msra.mxu0 0
        %282 = vmatprep.subr.bf16.mxu0 0
        %283 = vmatpush1.bf16.msra.mxu0 0
        %284 = vmatprep.subr.bf16.mxu0 0
        %285 = vmatpush1.bf16.msra.mxu0 0
        %286 = vmatprep.subr.bf16.mxu0 0
        %287 = vmatpush1.bf16.msra.mxu0 0
        %288 = vmatprep.subr.bf16.mxu0 0
        %289 = vmatpush1.bf16.msra.mxu0 0
        %290 = vmatprep.mubr.bf16.mxu0 0
        %291 = vmatmul.mubr.bf16.gmra.mrb[0].mxu0 %v243
        %v292 = vpop.f32.mrb[0].mxu0
        %v293 = vadd.f32 %v192, %v292
        %v294 = vpop.f32.mrb[0].mxu0
        %v295 = vpop.f32.mrb[0].mxu0
        %v296 = vadd.f32 %v197, %v295
        %v297 = vpop.f32.mrb[0].mxu0
        %298 = vmatprep.mubr.bf16.mxu0 0
        %299 = vmatmul.mubr.bf16.gmra.mrb[0].mxu0 %v246
        %v300 = vpop.f32.mrb[0].mxu0
        %v301 = vadd.f32 %v202, %v300
        %v302 = vpop.f32.mrb[0].mxu0
        %v303 = vpop.f32.mrb[0].mxu0
        %v304 = vadd.f32 %v207, %v303
        %v305 = vpop.f32.mrb[0].mxu0
        %306 = vmatprep.mubr.bf16.mxu0 0
        %307 = vmatmul.mubr.bf16.gmra.mrb[0].mxu0 %v249
        %v308 = vpop.f32.mrb[0].mxu0
        %v309 = vadd.f32 %v212, %v308
        %v310 = vpop.f32.mrb[0].mxu0
        %v311 = vpop.f32.mrb[0].mxu0
        %v312 = vadd.f32 %v217, %v311
        %v313 = vpop.f32.mrb[0].mxu0
        %314 = vmatprep.mubr.bf16.mxu0 0
        %315 = vmatmul.mubr.bf16.gmra.mrb[0].mxu0 %v252
        %v316 = vpop.f32.mrb[0].mxu0
        %v317 = vadd.f32 %v222, %v316
        %v318 = vpop.f32.mrb[0].mxu0
        %v319 = vpop.f32.mrb[0].mxu0
        %v320 = vadd.f32 %v227, %v319
        %v321 = vpop.f32.mrb[0].mxu0
        %322 = vdwg.mxu0
        %v323 = vmax.f32 %v293, 0.0
        %v324 = vmax.f32 %v296, 0.0
        %v325 = vmax.f32 %v301, 0.0
        %v326 = vmax.f32 %v304, 0.0
        %v327 = vmax.f32 %v309, 0.0
        %v328 = vmax.f32 %v312, 0.0
        %v329 = vmax.f32 %v317, 0.0
        %v330 = vmax.f32 %v320, 0.0
        %v331 = vpack.c.bf16 %v324, %v323
        %v332 = vpack.c.bf16 %v326, %v325
        %v333 = vpack.c.bf16 %v328, %v327
        %v334 = vpack.c.bf16 %v330, %v329
        %335 = vset.pattern.permute.xlu0 73
        %336 = vperm.xlu0 %335, %v176
        %v337 = vpop.permute.xlu0 %336
        %339 = vset.pattern.permute.xlu0 73
        %340 = vperm.xlu0 %339, %v177
        %v341 = vpop.permute.xlu0 %340
        %343 = vset.pattern.permute.xlu0 73
        %344 = vperm.xlu0 %343, %v178
        %v345 = vpop.permute.xlu0 %344
        %347 = vset.pattern.permute.xlu0 73
        %348 = vperm.xlu0 %347, %v179
        %v349 = vpop.permute.xlu0 %348
        %351 = vset.pattern.permute.xlu0 73
        %352 = vperm.xlu0 %351, %v180
        %v353 = vpop.permute.xlu0 %352
        %355 = vset.pattern.permute.xlu0 73
        %356 = vperm.xlu0 %355, %v181
        %v357 = vpop.permute.xlu0 %356
        %359 = vset.pattern.permute.xlu0 73
        %360 = vperm.xlu0 %359, %v182
        %v361 = vpop.permute.xlu0 %360
        %363 = vset.pattern.permute.xlu0 73
        %364 = vperm.xlu0 %363, %v183
        %v365 = vpop.permute.xlu0 %364
        %vm367 = vcmask 523264
        %v369 = vsel %vm367, %v184, 0
        %v372 = vsel %vm367, %v185, 0
        %v375 = vsel %vm367, %v186, 0
        %v378 = vsel %vm367, %v187, 0
        %380 = vmatprep.subr.bf16.mxu0 0
        %381 = vmatpush1.bf16.msra.mxu0 %v331
        %382 = vmatprep.subr.bf16.mxu0 0
        %383 = vmatpush1.bf16.msra.mxu0 %v332
        %384 = vmatprep.subr.bf16.mxu0 0
        %385 = vmatpush1.bf16.msra.mxu0 %v333
        %386 = vmatprep.subr.bf16.mxu0 0
        %387 = vmatpush1.bf16.msra.mxu0 %v334
        %388 = vmatprep.subr.bf16.mxu0 0
        %389 = vmatpush1.bf16.msra.mxu0 0
        %390 = vmatprep.subr.bf16.mxu0 0
        %391 = vmatpush1.bf16.msra.mxu0 0
        %392 = vmatprep.subr.bf16.mxu0 0
        %393 = vmatpush1.bf16.msra.mxu0 0
        %394 = vmatprep.subr.bf16.mxu0 0
        %395 = vmatpush1.bf16.msra.mxu0 0
        %396 = vmatprep.subr.bf16.mxu0 0
        %397 = vmatpush1.bf16.msra.mxu0 0
        %398 = vmatprep.subr.bf16.mxu0 0
        %399 = vmatpush1.bf16.msra.mxu0 0
        %400 = vmatprep.subr.bf16.mxu0 0
        %401 = vmatpush1.bf16.msra.mxu0 0
        %402 = vmatprep.subr.bf16.mxu0 0
        %403 = vmatpush1.bf16.msra.mxu0 0
        %404 = vmatprep.subr.bf16.mxu0 0
        %405 = vmatpush1.bf16.msra.mxu0 0
        %406 = vmatprep.subr.bf16.mxu0 0
        %407 = vmatpush1.bf16.msra.mxu0 0
        %408 = vmatprep.subr.bf16.mxu0 0
        %409 = vmatpush1.bf16.msra.mxu0 0
        %410 = vmatprep.subr.bf16.mxu0 0
        %411 = vmatpush1.bf16.msra.mxu0 0
        %412 = vmatprep.mubr.bf16.mxu0 0
        %413 = vmatmul.mubr.bf16.gmra.mrb[0].mxu0 %v369
        %v414 = vpop.f32.mrb[0].mxu0
        %v415 = vadd.f32 %v337, %v414
        %v416 = vpop.f32.mrb[0].mxu0
        %v417 = vpop.f32.mrb[0].mxu0
        %v418 = vadd.f32 %v341, %v417
        %v419 = vpop.f32.mrb[0].mxu0
        %420 = vmatprep.mubr.bf16.mxu0 0
        %421 = vmatmul.mubr.bf16.gmra.mrb[0].mxu0 %v372
        %v422 = vpop.f32.mrb[0].mxu0
        %v423 = vadd.f32 %v345, %v422
        %v424 = vpop.f32.mrb[0].mxu0
        %v425 = vpop.f32.mrb[0].mxu0
        %v426 = vadd.f32 %v349, %v425
        %v427 = vpop.f32.mrb[0].mxu0
        %428 = vmatprep.mubr.bf16.mxu0 0
        %429 = vmatmul.mubr.bf16.gmra.mrb[0].mxu0 %v375
        %v430 = vpop.f32.mrb[0].mxu0
        %v431 = vadd.f32 %v353, %v430
        %v432 = vpop.f32.mrb[0].mxu0
        %v433 = vpop.f32.mrb[0].mxu0
        %v434 = vadd.f32 %v357, %v433
        %v435 = vpop.f32.mrb[0].mxu0
        %436 = vmatprep.mubr.bf16.mxu0 0
        %437 = vmatmul.mubr.bf16.gmra.mrb[0].mxu0 %v378
        %v438 = vpop.f32.mrb[0].mxu0
        %v439 = vadd.f32 %v361, %v438
        %v440 = vpop.f32.mrb[0].mxu0
        %v441 = vpop.f32.mrb[0].mxu0
        %v442 = vadd.f32 %v365, %v441
        %v443 = vpop.f32.mrb[0].mxu0
        %444 = vdwg.mxu0
        %v445 = vmax.f32 %v415, 0.0
        %v446 = vmax.f32 %v418, 0.0
        %v447 = vmax.f32 %v423, 0.0
        %v448 = vmax.f32 %v426, 0.0
        %v449 = vmax.f32 %v431, 0.0
        %v450 = vmax.f32 %v434, 0.0
        %v451 = vmax.f32 %v439, 0.0
        %v452 = vmax.f32 %v442, 0.0
        %453 = vset.pattern.permute.xlu0 74
        %454 = vperm.xlu0 %453, %v176
        %v455 = vpop.permute.xlu0 %454
        %457 = vset.pattern.permute.xlu0 74
        %458 = vperm.xlu0 %457, %v177
        %v459 = vpop.permute.xlu0 %458
        %461 = vset.pattern.permute.xlu0 74
        %462 = vperm.xlu0 %461, %v178
        %v463 = vpop.permute.xlu0 %462
        %465 = vset.pattern.permute.xlu0 74
        %466 = vperm.xlu0 %465, %v179
        %v467 = vpop.permute.xlu0 %466
        %469 = vset.pattern.permute.xlu0 74
        %470 = vperm.xlu0 %469, %v180
        %v471 = vpop.permute.xlu0 %470
        %473 = vset.pattern.permute.xlu0 74
        %474 = vperm.xlu0 %473, %v181
        %v475 = vpop.permute.xlu0 %474
        %477 = vset.pattern.permute.xlu0 74
        %478 = vperm.xlu0 %477, %v182
        %v479 = vpop.permute.xlu0 %478
        %481 = vset.pattern.permute.xlu0 74
        %482 = vperm.xlu0 %481, %v183
        %v483 = vpop.permute.xlu0 %482
        %v485 = vmul.f32 %v445, %v455
        %v486 = vmul.f32 %v446, %v459
        %v487 = vmul.f32 %v447, %v463
        %v488 = vmul.f32 %v448, %v467
        %v489 = vmul.f32 %v449, %v471
        %v490 = vmul.f32 %v450, %v475
        %v491 = vmul.f32 %v451, %v479
        %v492 = vmul.f32 %v452, %v483
        %v493 = vadd.f32 %v485, %v486
        %v494 = vadd.f32 %v493, %v487
        %v495 = vadd.f32 %v494, %v488
        %v496 = vadd.f32 %v495, %v489
        %v497 = vadd.f32 %v496, %v490
        %v498 = vadd.f32 %v497, %v491
        %v499 = vadd.f32 %v498, %v492
        %v500 = vrot.slane %v499, 4
        %v501 = vadd.f32 %v499, %v500
        %v502 = vrot.slane %v501, 2
        %v503 = vadd.f32 %v501, %v502
        %v504 = vrot.slane %v503, 1
        %v505 = vadd.f32 %v503, %v504
        %507 = vset.pattern.permute.xlu0 75
        %508 = vperm.xlu0 %507, %v188
        %v509 = vpop.permute.xlu0 %508
        %v511 = vadd.f32 %v505, %v509
        %512 = vst [vmem:[%s172] sm:$0x1] %v511
        %s513 = sand.u32 %s75, 1
        %s514 = scalar_lea.sflag [#allocation4], %s513
        %s515 = sand.u32 %s75, 1
        %s516 = scalar_lea.vmem [#allocation7], %s515
        // Predicated region
        $region37: #{tpu_custom_call.1} parent=27 // pred_check
          %p517 = pneg %p85
        $region38: #{tpu_custom_call.1} parent=27 // pred_check_branch
          %519 = sbr.rel (%p517) target = $region40
        $region39: #{tpu_custom_call.1} parent=27 // pred_region
          %s521 = ssub.s32 16, 16
          %522 = vsyncadd %s514, %s521
          %s523 = smul.addr %s20, 16
          %s524 = scalar_lea.hbm %s2, %s523
          %s526 = sshll.u32 %s516, 4
          %s527 = int_to_ptr.vmem [resolvable:$true] %s526
          %529 = dma.vmem_to_hbm [thread:$0]  %s527, 16, %s524, %s514
        $region40: #{tpu_custom_call.1} parent=27 // pred_fallthru
          _
      $region28: #{tpu_custom_call.1} parent=5 // pred_fallthru
        _
      %p530 = scmp.le.s32.totalorder 2, %s15
      // Predicated region
      $region41: #{tpu_custom_call.1} parent=5 // pred_check
        %p531 = pneg %p530
      $region42: #{tpu_custom_call.1} parent=5 // pred_check_branch
        %533 = sbr.rel (%p531) target = $region44
      $region43: #{tpu_custom_call.1} parent=5 // pred_region
        %s534 = ssub.s32 %s15, 2
        // Predicated region
        $region45: #{tpu_custom_call.1} parent=43 // pred_check
          %p535 = pneg %p91
        $region46: #{tpu_custom_call.1} parent=43 // pred_check_branch
          %537 = sbr.rel (%p535) target = $region48
        $region47: #{tpu_custom_call.1} parent=43 // pred_region
          %s538 = sand.u32 %s76, 1
          %s539 = scalar_lea.sflag [#allocation4], %s538
          %s540 = sand.u32 %s76, 1
          %s541 = scalar_lea.vmem [#allocation7], %s540
          %542 = dma.done %s539, 16
        $region48: #{tpu_custom_call.1} parent=43 // pred_fallthru
          _
      $region44: #{tpu_custom_call.1} parent=5 // pred_fallthru
        _
    $region6: #{tpu_custom_call.1} parent=1 // loop_footer
      %s19 = sadd.s32 1, %s15
    $region7: #{tpu_custom_call.1} parent=1 // loop_footer_branch
      %14 = sbr.rel target = $region3
    $region8: #{tpu_custom_call.1} parent=1 // loop_exit
      _
    %543 = vsyncpa [#allocation3], 1
    %s544 = scalar_lea.sflag [#allocation3], 1
    %545 = vsyncpa %s544, 1
    %546 = vsyncpa [#allocation6], 1
    %547 = vsyncpa [#allocation4], 1
    %s548 = scalar_lea.sflag [#allocation4], 1
    %549 = vsyncpa %s548, 1

</llo_original>
